<compile_context>
chip_gen: v6e
topology: v6e:2x2x1
jax: 0.10.0
libtpu: 0.0.40
codegen_flags: <defaults>
</compile_context>

<pallas_src>
import math

import jax
import jax.numpy as jnp
from jax.experimental import pallas as pl
from jax.experimental.pallas import tpu as pltpu

TWO_PI = 2.0 * math.pi

_LANES = 128               # vreg lane width
_SUBLANES = 8              # vreg sublane depth (f32)
_NCORES = 2                # leading 'parallel' axis: 2 TensorCores on v7x
_PALLAS_MIN_DIMS = 1 << 16  # below this, XLA's fused sin+reduce wins


def _round_up(x: int, m: int) -> int:
    return ((x + m - 1) // m) * m


def _energy_kernel(x_ref, out_ref, acc_ref):
    """Accumulate sum(sin(2*pi*x)) over one (tile_rows, 128) tile.

    x_ref:   (tile_rows, 128) f32 VMEM input tile
    out_ref: (1, 8, 128)      f32 per-core partial-sum block
    acc_ref: (8, 128)         f32 persistent VMEM accumulator
    """
    step = pl.program_id(1)

    @pl.when(step == 0)
    def _():
        acc_ref[...] = jnp.zeros_like(acc_ref)

    x = x_ref[...]                        # (tile_rows, 128)
    s = jnp.sin(TWO_PI * x)               # VPU mul + EUP sin
    # Fold tile_rows down onto the 8 sublanes: pure vreg-wise adds (VPU),
    # no cross-lane XLU reduce and no lane-sparse store in the hot loop.
    tile_rows = x_ref.shape[0]
    acc_ref[...] += jnp.sum(
        s.reshape(tile_rows // _SUBLANES, _SUBLANES, _LANES), axis=0)

    @pl.when(step == pl.num_programs(1) - 1)
    def _():
        out_ref[0, :, :] = acc_ref[...]


def simple_energy_forward(location, *, tile_rows: int = 2048,
                          force_pallas: bool = False):
    """E = sum(sin(2*pi*location)) — the Eggcarton energy of SimpleEnergy.

    location: (dims,) parameter vector.
    returns:  scalar float32 energy.
    """
    dims = location.shape[0]
    x = location.astype(jnp.float32).reshape(-1)

    # Small parameter vectors: launch overhead dominates; let XLA fuse it.
    if dims < _PALLAS_MIN_DIMS and not force_pallas:
        return jnp.sum(jnp.sin(TWO_PI * x))

    # Lane-dense layout: zero-pad (sin(2*pi*0) == 0 -> inert) and view as
    # (rows_padded, 128).
    rows = pl.cdiv(dims, _LANES)
    rows8 = _round_up(rows, _SUBLANES)
    # Shrink the tile if the whole problem is smaller than one tile per core,
    # so padding stays bounded.
    tile_rows = min(tile_rows, _round_up(pl.cdiv(rows8, _NCORES), _SUBLANES))
    tile_rows = max(_SUBLANES, _round_up(tile_rows, _SUBLANES))
    rows_padded = _round_up(rows8, tile_rows * _NCORES)
    steps = rows_padded // (tile_rows * _NCORES)

    x = jnp.pad(x, (0, rows_padded * _LANES - dims))
    x = x.reshape(rows_padded, _LANES)

    partials = pl.pallas_call(
        _energy_kernel,
        out_shape=jax.ShapeDtypeStruct((_NCORES, _SUBLANES, _LANES),
                                       jnp.float32),
        grid_spec=pltpu.PrefetchScalarGridSpec(
            num_scalar_prefetch=0,
            grid=(_NCORES, steps),
            in_specs=[
                # Core c streams the contiguous row range
                # [c*steps*tile_rows, (c+1)*steps*tile_rows).
                pl.BlockSpec((tile_rows, _LANES),
                             lambda c, s: (c * steps + s, 0)),
            ],
            out_specs=pl.BlockSpec((1, _SUBLANES, _LANES),
                                   lambda c, s: (c, 0, 0)),
            scratch_shapes=[pltpu.VMEM((_SUBLANES, _LANES), jnp.float32)],
        ),
        compiler_params=pltpu.CompilerParams(
            dimension_semantics=("parallel", "arbitrary")),
    )(x)

    # 2 * 8 * 128 = 2048 partials: trivial final reduce in XLA.
    return jnp.sum(partials)


if __name__ == "__main__":
    key = jax.random.PRNGKey(0)
    k1, k2, k3 = jax.random.split(key, 3)

    # 1) Module default: dims=2 (jnp fallback path).
    loc_small = jax.random.normal(k1, (2,), dtype=jnp.float32)
    e_small = simple_energy_forward(loc_small)
    jax.block_until_ready(e_small)
    ref_small = jnp.sum(jnp.sin(TWO_PI * loc_small))
    assert jnp.allclose(e_small, ref_small, atol=1e-5, rtol=1e-5), \
        (e_small, ref_small)

    # 2) Same dims=2, forced through the Pallas kernel (tiny tile).
    e_small_k = simple_energy_forward(loc_small, tile_rows=8,
                                      force_pallas=True)
    jax.block_until_ready(e_small_k)
    assert jnp.allclose(e_small_k, ref_small, atol=1e-5, rtol=1e-5), \
        (e_small_k, ref_small)

    # 3) Multi-tile, multi-"core" grid (grid=(2, 3)) — still small data.
    loc_med = jax.random.normal(k2, (10_000,), dtype=jnp.float32)
    e_med = simple_energy_forward(loc_med, tile_rows=16, force_pallas=True)
    jax.block_until_ready(e_med)
    ref_med = jnp.sum(jnp.sin(TWO_PI * loc_med))
    assert jnp.allclose(e_med, ref_med, atol=1e-2, rtol=1e-4), (e_med, ref_med)

    # 4) Large enough to take the Pallas path with default tiling.
    loc_big = jax.random.normal(k3, (70_000,), dtype=jnp.float32)
    e_big = simple_energy_forward(loc_big)
    jax.block_until_ready(e_big)
    ref_big = jnp.sum(jnp.sin(TWO_PI * loc_big))
    assert jnp.allclose(e_big, ref_big, atol=2e-2, rtol=1e-3), (e_big, ref_big)

    print("KERNEL_OK")
</pallas_src>

<mosaic_0001>
module attributes {stable_mosaic.version = 11 : i64} {
  func.func @_energy_kernel(%arg0: i32, %arg1: i32, %arg2: memref<8x128xf32, #tpu.memory_space<vmem>>, %arg3: memref<1x8x128xf32, #tpu.memory_space<vmem>>, %arg4: memref<8x128xf32, #tpu.memory_space<vmem>>) attributes {dimension_semantics = [#tpu.dimension_semantics<parallel>, #tpu.dimension_semantics<arbitrary>], iteration_bounds = array<i64: 2, 1>, scalar_prefetch = 0 : i64, scratch_operands = 1 : i64, tpu.core_type = #tpu.core_type<tc>, window_params = [{transform_indices = @transform_0, window_bounds = array<i64: 8, 128>}, {transform_indices = @transform_1, window_bounds = array<i64: 1, 8, 128>}]} {
    %c0_i32 = arith.constant 0 : i32
    %0 = arith.cmpi eq, %arg1, %c0_i32 : i32
    %1 = arith.extui %0 : i1 to i32
    %c0_i32_0 = arith.constant 0 : i32
    %2 = arith.cmpi ne, %1, %c0_i32_0 : i32
    scf.if %2 {
      %cst_9 = arith.constant 0.000000e+00 : f32
      %15 = vector.broadcast %cst_9 : f32 to vector<8x128xf32>
      %c0_10 = arith.constant 0 : index
      %c0_11 = arith.constant 0 : index
      %16 = vector.load %arg4[%c0_10, %c0_11] : memref<8x128xf32, #tpu.memory_space<vmem>>, vector<8x128xf32>
      tpu.vector_store %arg4[%c0_10, %c0_11], %15 {strides = array<i32>} : memref<8x128xf32, #tpu.memory_space<vmem>>, vector<8x128xf32>,
    } else {
    }
    %c0 = arith.constant 0 : index
    %c0_1 = arith.constant 0 : index
    %3 = vector.load %arg2[%c0, %c0_1] : memref<8x128xf32, #tpu.memory_space<vmem>>, vector<8x128xf32>
    %cst = arith.constant 6.28318548 : f32
    %4 = vector.broadcast %cst : f32 to vector<8x128xf32>
    %5 = arith.mulf %4, %3 : vector<8x128xf32>
    %6 = math.sin %5 : vector<8x128xf32>
    %c0_2 = arith.constant 0 : index
    %c0_3 = arith.constant 0 : index
    %7 = vector.load %arg4[%c0_2, %c0_3] : memref<8x128xf32, #tpu.memory_space<vmem>>, vector<8x128xf32>
    %8 = vector.shape_cast %6 : vector<8x128xf32> to vector<1x8x128xf32>
    %cst_4 = arith.constant dense<0.000000e+00> : vector<8x128xf32>
    %9 = vector.multi_reduction <add>, %8, %cst_4 [0] : vector<1x8x128xf32> to vector<8x128xf32>
    %10 = arith.addf %7, %9 : vector<8x128xf32>
    %c0_5 = arith.constant 0 : index
    %c0_6 = arith.constant 0 : index
    %11 = vector.load %arg4[%c0_5, %c0_6] : memref<8x128xf32, #tpu.memory_space<vmem>>, vector<8x128xf32>
    tpu.vector_store %arg4[%c0_5, %c0_6], %10 {strides = array<i32>} : memref<8x128xf32, #tpu.memory_space<vmem>>, vector<8x128xf32>,
    %c0_i32_7 = arith.constant 0 : i32
    %12 = arith.cmpi eq, %arg1, %c0_i32_7 : i32
    %13 = arith.extui %12 : i1 to i32
    %c0_i32_8 = arith.constant 0 : i32
    %14 = arith.cmpi ne, %13, %c0_i32_8 : i32
    scf.if %14 {
      %c0_9 = arith.constant 0 : index
      %c0_10 = arith.constant 0 : index
      %15 = vector.load %arg4[%c0_9, %c0_10] : memref<8x128xf32, #tpu.memory_space<vmem>>, vector<8x128xf32>
      %c0_11 = arith.constant 0 : index
      %c0_12 = arith.constant 0 : index
      %c0_13 = arith.constant 0 : index
      %16 = vector.load %arg3[%c0_11, %c0_12, %c0_13] : memref<1x8x128xf32, #tpu.memory_space<vmem>>, vector<1x8x128xf32>
      %17 = vector.shape_cast %16 : vector<1x8x128xf32> to vector<8x128xf32>
      %18 = vector.shape_cast %15 : vector<8x128xf32> to vector<1x8x128xf32>
      tpu.vector_store %arg3[%c0_11, %c0_12, %c0_13], %18 {strides = array<i32>} : memref<1x8x128xf32, #tpu.memory_space<vmem>>, vector<1x8x128xf32>,
    } else {
    }
    return
  }
  func.func @transform_0(%arg0: i32, %arg1: i32) -> (i32, i32) {
    %c1_i32 = arith.constant 1 : i32
    %0 = arith.muli %arg0, %c1_i32 : i32
    %1 = arith.addi %0, %arg1 : i32
    %c0_i32 = arith.constant 0 : i32
    %c0_i32_0 = arith.constant 0 : i32
    return %1, %c0_i32 : i32, i32
  }
  func.func @transform_1(%arg0: i32, %arg1: i32) -> (i32, i32, i32) {
    %c0_i32 = arith.constant 0 : i32
    %c0_i32_0 = arith.constant 0 : i32
    %c0_i32_1 = arith.constant 0 : i32
    return %arg0, %c0_i32, %c0_i32_0 : i32, i32, i32
  }
}

</mosaic_0001>

<llo_original>
// kernel: tpu_custom_call.1
$region0: #{tpu_custom_call.1}
  #allocation0 [shape = 'u32[]', space=smem, size = 0x4, offset = 0x4, fixed_abs, tag = 'smem constant byte address 0x4 - core index']
  #allocation1 [shape = 'u32[144,128]{1,0:T(1,128)}', space=vmem, size = 0x12000, scoped, tag = 'internal scratch']
  #allocation2 [shape = 'f32[8,128]{1,0:T(8,128)}', space=vmem, size = 0x1000, scoped, tag = 'scratch operand']
  %s0 = inlined_call_operand.hbm [shape: f32[16,128], index: 0, kind: input, shape index: {}]
  %s1 = inlined_call_operand.hbm [shape: f32[2,8,128], index: 1, kind: output, shape index: {}]
  %s2 = sld [smem:[#allocation0]]
  $region49: #{tpu_custom_call.1} parent=0
    _
  %s4 = ssub.s32 1, %s2
  %s5 = scalar_select 0, %s4, %s2
  $region1: #{tpu_custom_call.1} parent=0
    #allocation3 [shape = 'u8[8192]{0}', space=vmem, size = 0x2000, scoped, tag = 'input window, operand 0']
    #allocation4 [shape = 's32[2]{0}', space=sflag, size = 0x8, scoped, tag = 'scoped memory for tpu_custom_call.1']
    #allocation5 [shape = 's32[2]{0}', space=sflag, size = 0x8, scoped, tag = 'scoped memory for tpu_custom_call.1']
    #allocation6 [shape = 'u8[8192]{0}', space=vmem, size = 0x2000, scoped, tag = 'output window, operand 0']
    %6 = vsyncpa [#allocation4], 0
    %s7 = scalar_lea.sflag [#allocation4], 1
    %8 = vsyncpa %s7, 0
    %9 = vsyncpa [#allocation5], 0
    %s10 = scalar_lea.sflag [#allocation5], 1
    %11 = vsyncpa %s10, 0
    loop: start=0, step=1, limit=4
    $region2: #{tpu_custom_call.1} parent=1 // loop_pre_header
      _
    $region3: #{tpu_custom_call.1} parent=1 // loop_header
      %s13 = sphi 0, %s17
      %p14 = scmp.ge.s32.totalorder %s13, 4
      %s20 = sphi 0, %s32
      %s21 = sphi 0, %s28
      %s22 = sphi 0, %s20
      %s23 = sphi 0, %s21
      %s24 = sphi 0, %s22
      %s25 = sphi 0, %s23
      %s37 = sphi 0, %s39
      %s40 = sphi 0, %s37
      %s41 = sphi 0, %s40
      %s57 = sphi 0, %s41
      %s63 = sphi 0, %s65
      %s66 = sphi 0, %s63
      %s67 = sphi 0, %s66
      %s83 = sphi 0, %s67
    $region4: #{tpu_custom_call.1} parent=1 // loop_header_branch
      %16 = sbr.rel (%p14) target = $region8
    $region5: #{tpu_custom_call.1} parent=1 // loop_body
      %s18 = ssub.s32 %s13, 1
      %s19 = ssub.s32 %s13, 2
      %s26 = sadd.s32 1, %s21
      %p27 = scmp.ge.s32.totalorder %s26, 1
      %s28 = scalar_select %p27, 0, %s26
      %s29 = sadd.s32 1, %s20
      %s30 = scalar_select %p27, %s29, %s20
      %p31 = scmp.ge.s32.totalorder %s30, 2
      %s32 = scalar_select %p31, 0, %s30
      %s33 = sadd.s32 %s20, %s21
      %s34 = sadd.s32 %s32, %s28
      %s35 = ssub.s32 %s33, %s34
      %p36 = scmp.eq.s32.totalorder %s35, 0
      %s38 = sadd.s32 %s37, 1
      %s39 = scalar_select %p36, %s37, %s38
      %p42 = pneg %p36
      %p43 = scmp.eq.s32.totalorder %s13, 1
      %p44 = por %p42, %p43
      %p45 = scmp.ne.s32.totalorder %s37, %s40
      %p46 = scmp.eq.s32.totalorder %s13, 0
      %p47 = por %p45, %p46
      %p48 = scmp.ne.s32.totalorder %s37, %s40
      %p49 = scmp.eq.s32.totalorder %s18, 1
      %p50 = por %p48, %p49
      %p51 = scmp.ne.s32.totalorder %s40, %s41
      %p52 = scmp.eq.s32.totalorder %s18, 0
      %p53 = por %p51, %p52
      %p54 = scmp.ne.s32.totalorder %s40, %s41
      %p55 = scmp.eq.s32.totalorder %s19, 1
      %p56 = por %p54, %p55
      %p58 = scmp.ne.s32.totalorder %s41, %s57
      %p59 = scmp.eq.s32.totalorder %s19, 0
      %p60 = por %p58, %p59
      %s61 = ssub.s32 %s20, %s32
      %p62 = scmp.eq.s32.totalorder %s61, 0
      %s64 = sadd.s32 %s63, 1
      %s65 = scalar_select %p62, %s63, %s64
      %p68 = pneg %p62
      %p69 = scmp.eq.s32.totalorder %s13, 1
      %p70 = por %p68, %p69
      %p71 = scmp.ne.s32.totalorder %s63, %s66
      %p72 = scmp.eq.s32.totalorder %s13, 0
      %p73 = por %p71, %p72
      %p74 = scmp.ne.s32.totalorder %s63, %s66
      %p75 = scmp.eq.s32.totalorder %s18, 1
      %p76 = por %p74, %p75
      %p77 = scmp.ne.s32.totalorder %s66, %s67
      %p78 = scmp.eq.s32.totalorder %s18, 0
      %p79 = por %p77, %p78
      %p80 = scmp.ne.s32.totalorder %s66, %s67
      %p81 = scmp.eq.s32.totalorder %s19, 1
      %p82 = por %p80, %p81
      %p84 = scmp.ne.s32.totalorder %s67, %s83
      %p85 = scmp.eq.s32.totalorder %s19, 0
      %p86 = por %p84, %p85
      %p87 = scmp.le.s32.totalorder 1, %s13
      %p88 = scmp.lt.s32.totalorder %s13, 3
      %p89 = pnand %p87, %p88
      %p90 = pneg %p89
      // Predicated region
      $region9: #{tpu_custom_call.1} parent=5 // pred_check
        _
      $region10: #{tpu_custom_call.1} parent=5 // pred_check_branch
        %92 = sbr.rel (%p89) target = $region12
      $region11: #{tpu_custom_call.1} parent=5 // pred_region
        %s93 = ssub.s32 %s13, 1
      $region12: #{tpu_custom_call.1} parent=5 // pred_fallthru
        _
      %p94 = scmp.lt.s32.totalorder %s13, 2
      // Predicated region
      $region13: #{tpu_custom_call.1} parent=5 // pred_check
        %p95 = pneg %p94
      $region14: #{tpu_custom_call.1} parent=5 // pred_check_branch
        %97 = sbr.rel (%p95) target = $region16
      $region15: #{tpu_custom_call.1} parent=5 // pred_region
        // Predicated region
        $region17: #{tpu_custom_call.1} parent=15 // pred_check
          %p98 = pneg %p47
        $region18: #{tpu_custom_call.1} parent=15 // pred_check_branch
          %100 = sbr.rel (%p98) target = $region20
        $region19: #{tpu_custom_call.1} parent=15 // pred_region
          %s101 = sand.u32 %s37, 1
          %s102 = scalar_lea.sflag [#allocation4], %s101
          %s103 = sand.u32 %s37, 1
          %s104 = smul.addr %s103, 8
          %s105 = scalar_lea.vmem [#allocation3], %s104
          %s106 = sadd.s32 %s20, %s21
          %s108 = ssub.s32 128, 128
          %109 = vsyncadd %s102, %s108
          %s110 = smul.addr %s106, 128
          %s111 = scalar_lea.hbm %s0, %s110
          %s113 = sshll.u32 %s105, 4
          %s114 = int_to_ptr.vmem [resolvable:$true] %s113
          %116 = dma.hbm_to_vmem [thread:$0]  %s111, 128, %s114, %s102
        $region20: #{tpu_custom_call.1} parent=15 // pred_fallthru
          _
      $region16: #{tpu_custom_call.1} parent=5 // pred_fallthru
        _
      %p117 = scmp.le.s32.totalorder 1, %s13
      %p118 = scmp.lt.s32.totalorder %s13, 3
      %p119 = pnand %p117, %p118
      %p120 = pneg %p119
      // Predicated region
      $region21: #{tpu_custom_call.1} parent=5 // pred_check
        _
      $region22: #{tpu_custom_call.1} parent=5 // pred_check_branch
        %122 = sbr.rel (%p119) target = $region24
      $region23: #{tpu_custom_call.1} parent=5 // pred_region
        %s123 = ssub.s32 %s13, 1
        %s124 = sand.u32 %s40, 1
        %s125 = scalar_lea.sflag [#allocation4], %s124
        %s126 = sand.u32 %s40, 1
        %s127 = smul.addr %s126, 8
        %s128 = scalar_lea.vmem [#allocation3], %s127
        // Predicated region
        $region25: #{tpu_custom_call.1} parent=23 // pred_check
          %p129 = pneg %p53
        $region26: #{tpu_custom_call.1} parent=23 // pred_check_branch
          %131 = sbr.rel (%p129) target = $region28
        $region27: #{tpu_custom_call.1} parent=23 // pred_region
          %132 = dma.done %s125, 128
        $region28: #{tpu_custom_call.1} parent=23 // pred_fallthru
          _
        %s133 = sand.u32 %s40, 1
        %s134 = scalar_lea.sflag [#allocation4], %s133
        %s135 = sand.u32 %s40, 1
        %s136 = smul.addr %s135, 8
        %s137 = scalar_lea.vmem [#allocation3], %s136
        %p138 = pneg %p53
        %p139 = pneg %p50
        %p140 = pneg %p79
        %p141 = pneg %p76
        %s142 = sand.u32 %s66, 1
        %s143 = scalar_lea.sflag [#allocation5], %s142
        %s144 = sand.u32 %s66, 1
        %s145 = smul.addr %s144, 8
        %s146 = scalar_lea.vmem [#allocation6], %s145
        %s147 = sadd.s32 %s22, %s23
        %p148 = scmp.eq.s32.totalorder %s23, 0
        // Predicated region
        $region29: #{tpu_custom_call.1} parent=23 // pred_check
          %p149 = pneg %p148
        $region30: #{tpu_custom_call.1} parent=23 // pred_check_branch
          %151 = sbr.rel (%p149) target = $region32
        $region31: #{tpu_custom_call.1} parent=23 // pred_region
          %152 = vst [vmem:[#allocation2] sm:$0xff] 0.0
        $region32: #{tpu_custom_call.1} parent=23 // pred_fallthru
          _
        %v153 = vld [vmem:[%s128] sm:$0xff]
        %v154 = vmul.f32 %v153, 6.2831855
        %v155 = vand.u32 2147483647, %v154
        %vm156 = vcmp.le.f32.partialorder %v155, 0.7853982
        %vm157 = vcmp.lt.s32.totalorder %v154, 0
        %v158 = vand.u32 %v154, 2139095040
        %v159 = vshrl.u32 %v158, 23
        %v160 = vsub.s32 %v159, 127
        %v161 = vand.u32 2147483647, %v154
        %v162 = vand.u32 %v161, 8388607
        %v163 = vor.u32 %v162, 8388608
        %v164 = vsub.s32 0, %v163
        %v165 = vadd.s32 %v160, 1
        %vm166 = vcmp.gt.s32.totalorder %v165, 0
        %v167 = vsel %vm166, %v165, 0
        %v168 = vshrl.u32 %v167, 5
        %v169 = vand.u32 %v167, 31
        %v170 = vsub.s32 32, %v169
        %v171 = vshrl.u32 683565275, %v170
        %v172 = vshll.u32 683565275, %v169
        %v173 = vshrl.u32 2475754826, %v170
        %v174 = vor.u32 %v172, %v173
        %v175 = vshll.u32 2475754826, %v169
        %v176 = vshrl.u32 2131351028, %v170
        %v177 = vor.u32 %v175, %v176
        %v178 = vshll.u32 2131351028, %v169
        %v179 = vshrl.u32 2102212464, %v170
        %v180 = vor.u32 %v178, %v179
        %v181 = vshll.u32 2102212464, %v169
        %v182 = vshrl.u32 920167782, %v170
        %v183 = vor.u32 %v181, %v182
        %v184 = vshll.u32 920167782, %v169
        %v185 = vshrl.u32 1326507024, %v170
        %v186 = vor.u32 %v184, %v185
        %vm187 = vcmp.lt.s32.totalorder %v168, 1
        %vm188 = vcmp.lt.s32.totalorder %v168, 2
        %vm189 = vcmp.lt.s32.totalorder %v168, 3
        %vm190 = vcmp.lt.s32.totalorder %v168, 4
        %v191 = vsel %vm187, %v171, %v174
        %v192 = vsel %vm190, %v180, 2102212464
        %v193 = vsel %vm189, %v177, %v192
        %v194 = vsel %vm188, %v191, %v193
        %v195 = vsel %vm187, %v174, %v177
        %v196 = vsel %vm190, %v183, 920167782
        %v197 = vsel %vm189, %v180, %v196
        %v198 = vsel %vm188, %v195, %v197
        %v199 = vsel %vm187, %v177, %v180
        %v200 = vsel %vm190, %v186, 1326507024
        %v201 = vsel %vm189, %v183, %v200
        %v202 = vsel %vm188, %v199, %v201
        %v203 = vshll.u32 %v163, 8
        %v204 = vmul.u32.u64.compose %v203, %v202
        %v205 = vextract.low.u32 %v204
        %v206 = vextract.high.u32 %v204
        %v207 = vmul.u32.u64.compose %v203, %v198
        %v208 = vextract.low.u32 %v207
        %v209 = vextract.high.u32 %v207
        %v210 = vmul.u32 %v203, %v194
        %v211 = vadd.s32 %v206, %v208
        %vm212 = vc.u32 %v206, %v208
        %v213 = vadd.s32 %v209, 1
        %v214 = vsel %vm212, %v213, %v209
        %v215 = vadd.s32 %v210, %v214
        %v216 = vadd.s32 %v215, 536870912
        %v217 = vshrl.u32 %v216, 30
        %v218 = vshll.u32 %v217, 30
        %v219 = vsub.s32 %v215, %v218
        %vm220 = vcmp.lt.s32.totalorder %v219, 0
        %v221 = vsub.s32 0, %v219
        %v222 = vsel %vm220, %v221, %v219
        %v223 = vclz %v222
        %v224 = vsub.s32 %v223, 2
        %vm225 = vcmp.gt.s32.totalorder 0, %v224
        %v226 = vsel %vm225, 0, %v224
        %v227 = vsub.s32 32, %v226
        %v228 = vshll.u32 %v219, %v226
        %v229 = vshrl.u32 %v211, %v227
        %v230 = vor.u32 %v228, %v229
        %v231 = vsub.s32 4294967266, %v226
        %v232 = vadd.s32 %v231, 127
        %v233 = vshll.u32 %v232, 23
        %v234 = vor.u32 4788187, %v233
        %v235 = vand.u32 2147483647, %v234
        %v237 = vcvt.s32.f32 %v230
        %v238 = vmul.f32 %v237, %v235
        %v239 = vxor.u32 %v238, 2147483648
        %v240 = vsel %vm157, %v239, %v238
        %v241 = vsub.s32 4, %v217
        %v242 = vsel %vm157, %v241, %v217
        %v243 = vsel %vm156, %v154, %v240
        %v244 = vsel %vm156, 0, %v242
        %v245 = vcosq.f32.pop %v243
        %v246 = vsinq.f32.pop %v243
        %vm247 = vweird.f32 %v154
        %v248 = vadd.s32 %v244, 3
        %v249 = vand.u32 %v248, 3
        %vm250 = vcmp.lt.s32.totalorder %v249, 2
        %vm251 = vcmp.eq.s32.totalorder %v249, 0
        %v252 = vxor.u32 %v246, 2147483648
        %v253 = vsel %vm251, %v245, %v252
        %vm254 = vcmp.eq.s32.totalorder %v249, 2
        %v255 = vxor.u32 %v245, 2147483648
        %v256 = vsel %vm254, %v255, %v246
        %v257 = vsel %vm250, %v253, %v256
        %v258 = vsel %vm247, nan, %v257
        %v259 = vld [vmem:[#allocation2] sm:$0xff]
        %v260 = vadd.f32 %v258, 0.0
        %v261 = vadd.f32 %v259, %v260
        %262 = vst [vmem:[#allocation2] sm:$0xff] %v261
        // Predicated region
        $region33: #{tpu_custom_call.1} parent=23 // pred_check
          %p263 = pneg %p148
        $region34: #{tpu_custom_call.1} parent=23 // pred_check_branch
          %265 = sbr.rel (%p263) target = $region36
        $region35: #{tpu_custom_call.1} parent=23 // pred_region
          %v266 = vld [vmem:[#allocation2] sm:$0xff]
          %267 = vst [vmem:[%s146] sm:$0xff] %v266
        $region36: #{tpu_custom_call.1} parent=23 // pred_fallthru
          _
        %s268 = sand.u32 %s66, 1
        %s269 = scalar_lea.sflag [#allocation5], %s268
        %s270 = sand.u32 %s66, 1
        %s271 = smul.addr %s270, 8
        %s272 = scalar_lea.vmem [#allocation6], %s271
        // Predicated region
        $region37: #{tpu_custom_call.1} parent=23 // pred_check
          %p273 = pneg %p76
        $region38: #{tpu_custom_call.1} parent=23 // pred_check_branch
          %275 = sbr.rel (%p273) target = $region40
        $region39: #{tpu_custom_call.1} parent=23 // pred_region
          %s277 = ssub.s32 128, 128
          %278 = vsyncadd %s269, %s277
          %s279 = smul.addr %s22, 128
          %s280 = scalar_lea.hbm %s1, %s279
          %s282 = sshll.u32 %s272, 4
          %s283 = int_to_ptr.vmem [resolvable:$true] %s282
          %285 = dma.vmem_to_hbm [thread:$0]  %s283, 128, %s280, %s269
        $region40: #{tpu_custom_call.1} parent=23 // pred_fallthru
          _
      $region24: #{tpu_custom_call.1} parent=5 // pred_fallthru
        _
      %p286 = scmp.le.s32.totalorder 2, %s13
      // Predicated region
      $region41: #{tpu_custom_call.1} parent=5 // pred_check
        %p287 = pneg %p286
      $region42: #{tpu_custom_call.1} parent=5 // pred_check_branch
        %289 = sbr.rel (%p287) target = $region44
      $region43: #{tpu_custom_call.1} parent=5 // pred_region
        %s290 = ssub.s32 %s13, 2
        // Predicated region
        $region45: #{tpu_custom_call.1} parent=43 // pred_check
          %p291 = pneg %p82
        $region46: #{tpu_custom_call.1} parent=43 // pred_check_branch
          %293 = sbr.rel (%p291) target = $region48
        $region47: #{tpu_custom_call.1} parent=43 // pred_region
          %s294 = sand.u32 %s67, 1
          %s295 = scalar_lea.sflag [#allocation5], %s294
          %s296 = sand.u32 %s67, 1
          %s297 = smul.addr %s296, 8
          %s298 = scalar_lea.vmem [#allocation6], %s297
          %299 = dma.done %s295, 128
        $region48: #{tpu_custom_call.1} parent=43 // pred_fallthru
          _
      $region44: #{tpu_custom_call.1} parent=5 // pred_fallthru
        _
    $region6: #{tpu_custom_call.1} parent=1 // loop_footer
      %s17 = sadd.s32 1, %s13
    $region7: #{tpu_custom_call.1} parent=1 // loop_footer_branch
      %12 = sbr.rel target = $region3
    $region8: #{tpu_custom_call.1} parent=1 // loop_exit
      _
    %300 = vsyncpa [#allocation4], 1
    %s301 = scalar_lea.sflag [#allocation4], 1
    %302 = vsyncpa %s301, 1
    %303 = vsyncpa [#allocation5], 1
    %s304 = scalar_lea.sflag [#allocation5], 1
    %305 = vsyncpa %s304, 1

</llo_original>
